<compile_context>
chip_gen: v7x
topology: tpu7x:2x2x1
jax: 0.10.0
libtpu: 0.0.40
codegen_flags: <defaults>
</compile_context>

<pallas_src>
import jax
import jax.numpy as jnp
from jax.experimental import pallas as pl
from jax.experimental.pallas import tpu as pltpu


# ------------------------------ Pallas kernels ------------------------------


def _bias_epilogue(wx, b128, o_ref):
    """o = wx + bias: add the 128-lane bias tile to each 128-lane slab of wx.

    Pure VPU adds + full-width lane-dense stores (good for v5e's single vst
    slot); no cross-lane (XLU) broadcast of a lane-0 slice.
    """
    th = o_ref.shape[-1]
    if th % 128 == 0 and th >= 128:
        for k in range(th // 128):
            sl = slice(k * 128, (k + 1) * 128)
            o_ref[:, sl] = (wx[:, sl] + b128).astype(o_ref.dtype)
    else:
        # Degenerate tiny-HW fallback (not hit at demo / realistic sizes).
        o_ref[...] = (wx + b128[:, 0:1]).astype(o_ref.dtype)


def _eps_kernel_mxu(x_ref, w_ref, b_ref, o_ref):
    """Channel mix on the MXU + f32 bias epilogue for one (batch, HW-tile) block.

    x_ref: (C, TH)  bf16 VMEM  input tile (batch dim squeezed by BlockSpec)
    w_ref: (C, C)   bf16 VMEM  shared channel-mix weight (resident: index_map=(0,0))
    b_ref: (C, 128) f32  VMEM  effective (CFG-combined) bias, lane-dense tile
    o_ref: (C, TH)  f32  VMEM  epsilon output tile
    """
    wx = jnp.dot(w_ref[...], x_ref[...], preferred_element_type=jnp.float32)
    _bias_epilogue(wx, b_ref[...], o_ref)


def _eps_kernel_vpu(x_ref, w_ref, b_ref, o_ref):
    """Tiny-C path: channel mix as fully unrolled scalar*vector FMAs on the VPU.

    A 4x4..8x8 weight uses <1% of the 128x128/256x256 systolic array while
    still paying vmatmul push + result-FIFO drain latency, so for C <= 8 the
    MXU (extended-issue slot) is left completely idle.

    x_ref: (C, TH)  bf16 VMEM
    w_ref: (C, C)   f32  SMEM  (weight read as scalars)
    b_ref: (C, 128) f32  VMEM
    o_ref: (C, TH)  f32  VMEM
    """
    c_dim = o_ref.shape[0]
    x = x_ref[...].astype(jnp.float32)  # f32 VPU epilogue (v5e has no bf16 VPU)
    rows = []
    for i in range(c_dim):              # static unroll: C*C scalar FMAs total
        acc = w_ref[i, 0] * x[0:1, :]
        for j in range(1, c_dim):
            acc = acc + w_ref[i, j] * x[j:j + 1, :]
        rows.append(acc)
    wx = jnp.concatenate(rows, axis=0)  # (C, TH)
    _bias_epilogue(wx, b_ref[...], o_ref)


# ------------------------------ Pallas wrapper -------------------------------


def _pick_tile_hw(hw: int, max_tile: int = 2048) -> int:
    """Largest lane-dense (multiple of 128) divisor of hw that is <= max_tile."""
    if hw <= max_tile or hw % 128 != 0:
        return hw
    for t in range(max_tile, 127, -128):
        if hw % t == 0:
            return t
    return 128


def eps_pallas(x, w_mix, bias_eff):
    """eps = W_mix @ x + bias_eff[..., None, None] as a single tiled Pallas call.

    x:        [B, C, H, W] float    (cast to bf16 for the HBM->VMEM DMA)
    w_mix:    [C, C]       f32      channel-mix weight
    bias_eff: [B, C]       f32      effective (already CFG-combined) bias
    returns   [B, C, H, W] f32
    """
    B, C, H, W = x.shape
    HW = H * W
    tile_hw = _pick_tile_hw(HW)
    n_hw = HW // tile_hw

    # bf16 inputs: mem-bound kernel at realistic diffusion sizes -> halve bytes.
    # (In a real sampler x_t would already be carried in bf16 between steps.)
    x_flat = x.reshape(B, C, HW)
    x_bf = x_flat if x_flat.dtype == jnp.bfloat16 else x_flat.astype(jnp.bfloat16)

    # Lane-dense 128-wide bias tile; CFG combine already folded in by the caller,
    # so the kernel has a single bias input and no SMEM scale operand.
    b128 = jnp.broadcast_to(bias_eff[:, :, None], (B, C, 128)).astype(jnp.float32)

    use_vpu = C <= 8
    if use_vpu:
        w = w_mix.astype(jnp.float32)
        w_spec = pl.BlockSpec(memory_space=pltpu.MemorySpace.SMEM)  # scalar reads
        kernel = _eps_kernel_vpu
        w_bytes = C * C * 4
    else:
        w = w_mix.astype(jnp.bfloat16)
        # Shared weight: constant index_map -> block stays resident across the grid
        # (no per-step re-DMA, no kron block-diagonal blowup).
        w_spec = pl.BlockSpec((C, C), lambda b, h: (0, 0))
        kernel = _eps_kernel_mxu
        w_bytes = C * C * 2

    # Explicit VMEM budget with headroom: v5e scoped default is 16 MiB,
    # v7x physical VMEM is 64 MiB (32 MiB scoped default).
    blk_bytes = 2 * (C * tile_hw * 2 + C * tile_hw * 4 + C * 128 * 4) + 2 * w_bytes
    vmem_limit = int(min(48 * 1024 * 1024, max(8 * 1024 * 1024, 4 * blk_bytes)))

    out = pl.pallas_call(
        kernel,
        out_shape=jax.ShapeDtypeStruct((B, C, HW), jnp.float32),
        grid=(B, n_hw),
        in_specs=[
            pl.BlockSpec((None, C, tile_hw), lambda b, h: (b, 0, h)),  # x tile
            w_spec,                                                    # weight
            pl.BlockSpec((None, C, 128), lambda b, h: (b, 0, 0)),      # bias tile
        ],
        out_specs=pl.BlockSpec((None, C, tile_hw), lambda b, h: (b, 0, h)),
        compiler_params=pltpu.CompilerParams(
            # Both grid axes are independent -> shard across v7x's 2 TensorCores.
            dimension_semantics=("parallel", "parallel"),
            vmem_limit_bytes=vmem_limit,
        ),
    )(x_bf, w, b128)
    return out.reshape(B, C, H, W)


# ------------------------------ model wrappers -------------------------------


class SyntheticNoiseModel:
    """Deterministic stand-in for the wrapped diffusion U-Net.

    eps(x, t, c) = W_mix @ x + (time_emb(t) @ W_t + c @ W_c)[:, :, None, None]
    """

    n_steps = 1000

    def __init__(self, channels: int, emb_size: int, t_dim: int = 16, key=None):
        if key is None:
            key = jax.random.PRNGKey(42)
        k1, k2, k3 = jax.random.split(key, 3)
        self.channels = channels
        self.emb_size = emb_size
        self.t_dim = t_dim
        self.w_mix = jax.random.normal(k1, (channels, channels), jnp.float32) * 0.3
        self.w_t = jax.random.normal(k2, (t_dim, channels), jnp.float32) * 0.1
        self.w_c = jax.random.normal(k3, (emb_size, channels), jnp.float32) * 0.1
        # jit once; the guidance scale is a traced operand, so different scale
        # values between sampling steps never trigger a retrace/recompile.
        self._eps_plain = jax.jit(self._eps_plain_impl)
        self._eps_guided = jax.jit(self._eps_guided_impl)

    # -- tiny XLA glue (time embedding + cond projection) ---------------------
    def _bias(self, t, c):
        half = self.t_dim // 2
        freqs = jnp.exp(
            -jnp.log(10000.0) * jnp.arange(half, dtype=jnp.float32) / half)
        args = t.astype(jnp.float32)[:, None] * freqs[None, :]
        temb = jnp.concatenate([jnp.sin(args), jnp.cos(args)], axis=-1)  # [B, t_dim]
        hi = jax.lax.Precision.HIGHEST
        return (jnp.dot(temb, self.w_t, precision=hi)
                + jnp.dot(c, self.w_c, precision=hi))                   # [B, C]

    # -- jitted entry points ---------------------------------------------------
    def _eps_plain_impl(self, x, t, c):
        return eps_pallas(x, self.w_mix, self._bias(t, c))

    def _eps_guided_impl(self, x, t, c, uncond_cond, uncond_scale):
        bias_c = self._bias(t, c)
        bias_u = self._bias(t, uncond_cond)
        # CFG combine fused into the (cheap) bias projection in XLA; exact for
        # this model because it is affine in the conditioning bias.
        b_eff = bias_u + uncond_scale * (bias_c - bias_u)
        return eps_pallas(x, self.w_mix, b_eff)

    # -- public API -------------------------------------------------------------
    def __call__(self, x, t, c):
        """x: [B,C,H,W] f32, t: [B] int32, c: [B,emb] f32 -> [B,C,H,W] f32."""
        return self._eps_plain(x, t, c)

    def eps_cfg(self, x, t, c, uncond_cond, uncond_scale):
        """Fused CFG path (exact only for this linear-in-bias synthetic model)."""
        return self._eps_guided(x, t, c, uncond_cond, uncond_scale)


class DiffusionSampler:
    """JAX/Pallas port of invldm.models.samplers.DiffusionSampler."""

    def __init__(self, model):
        self.model = model
        self.n_steps = model.n_steps

    def get_eps(self, x, t, c, *, uncond_scale: float, uncond_cond):
        if uncond_cond is None or uncond_scale == 1.0:
            return self.model(x, t, c)

        if hasattr(self.model, "eps_cfg"):
            # Fast path: ONE pallas_call on un-duplicated x, no [x;x] concat,
            # no second CFG kernel, no e_all HBM round trip.
            return self.model.eps_cfg(x, t, c, uncond_cond, uncond_scale)

        # General fallback, faithful to the PyTorch reference (a real U-Net is
        # not linear in c, so it must run on the duplicated batch).
        b = x.shape[0]
        x_in = jnp.concatenate([x, x], axis=0)
        t_in = jnp.concatenate([t, t], axis=0)
        c_in = jnp.concatenate([uncond_cond, c], axis=0)
        e_all = self.model(x_in, t_in, c_in)
        e_uncond, e_cond = e_all[:b], e_all[b:]
        return e_uncond + uncond_scale * (e_cond - e_uncond)

    def forward(self):
        # The PyTorch module's forward() literally returns None.
        return None

    # TODO(synk): sample/paint/q_sample raise NotImplementedError in the source
    # (abstract base class) and are not translated.


# ----------------------------------- main ------------------------------------


if __name__ == "__main__":
    B, C, H, W = 2, 4, 16, 16
    EMB = 32

    key = jax.random.PRNGKey(0)
    kx, kt, kc, ku = jax.random.split(key, 4)
    x = jax.random.normal(kx, (B, C, H, W), jnp.float32)
    t = jax.random.randint(kt, (B,), 0, 1000, jnp.int32)
    c = jax.random.normal(kc, (B, EMB), jnp.float32)
    uncond_cond = jax.random.normal(ku, (B, EMB), jnp.float32)
    uncond_scale = 3.0

    model = SyntheticNoiseModel(channels=C, emb_size=EMB,
                                key=jax.random.PRNGKey(42))
    sampler = DiffusionSampler(model)

    # fused CFG path (single tiled Pallas kernel on un-duplicated x)
    e_t = sampler.get_eps(x, t, c,
                          uncond_scale=uncond_scale, uncond_cond=uncond_cond)
    e_t = jax.block_until_ready(e_t)
    assert e_t.shape == (B, C, H, W) and e_t.dtype == jnp.float32

    # pure-JAX references
    hi = jax.lax.Precision.HIGHEST

    def ref_model(m, xr, tr, cr, match_kernel_precision):
        cm = m.channels
        xf = xr.reshape(xr.shape[0], cm, -1)
        wm = m.w_mix
        if match_kernel_precision:
            xf = xf.astype(jnp.bfloat16).astype(jnp.float32)
            if cm > 8:  # MXU path also rounds the weight to bf16
                wm = wm.astype(jnp.bfloat16).astype(jnp.float32)
        bias = m._bias(tr, cr)
        out = jnp.einsum("ij,bjk->bik", wm, xf, precision=hi) + bias[:, :, None]
        return out.reshape(xr.shape)

    def ref_cfg(m, xr, tr, cr, cu, s, match):
        e_u = ref_model(m, xr, tr, cu, match)
        e_c = ref_model(m, xr, tr, cr, match)
        return e_u + s * (e_c - e_u)

    # (1) tight check against the bf16-input-matched reference (kernel exactness)
    e_ref_match = ref_cfg(model, x, t, c, uncond_cond, uncond_scale, True)
    assert jnp.allclose(e_t, e_ref_match, atol=1e-4, rtol=1e-4)
    # (2) semantic check against the full-f32 PyTorch-equivalent reference
    #     (loose tolerance accounts for the intentional bf16 input rounding)
    e_ref_f32 = ref_cfg(model, x, t, c, uncond_cond, uncond_scale, False)
    assert jnp.allclose(e_t, e_ref_f32, atol=1e-1, rtol=1e-1)

    # no-guidance branch (uncond_scale == 1.0 / uncond_cond None)
    e_plain = jax.block_until_ready(
        sampler.get_eps(x, t, c, uncond_scale=1.0, uncond_cond=None))
    assert jnp.allclose(e_plain, ref_model(model, x, t, c, True),
                        atol=1e-4, rtol=1e-4)

    # duplicated-batch semantics (the literal PyTorch path) through the same
    # kernel (batch 2B on the grid) must match the fused path (model is linear).
    x_in = jnp.concatenate([x, x], axis=0)
    t_in = jnp.concatenate([t, t], axis=0)
    c_in = jnp.concatenate([uncond_cond, c], axis=0)
    e_all = jax.block_until_ready(model(x_in, t_in, c_in))
    e_general = e_all[:B] + uncond_scale * (e_all[B:] - e_all[:B])
    assert jnp.allclose(e_general, e_t, atol=1e-4, rtol=1e-4)

    # also exercise the MXU (real-C) kernel path with C=128
    C2 = 128
    kx2, kc2, ku2 = jax.random.split(jax.random.PRNGKey(7), 3)
    x2 = jax.random.normal(kx2, (B, C2, H, W), jnp.float32)
    c2 = jax.random.normal(kc2, (B, EMB), jnp.float32)
    u2 = jax.random.normal(ku2, (B, EMB), jnp.float32)
    model2 = SyntheticNoiseModel(channels=C2, emb_size=EMB,
                                 key=jax.random.PRNGKey(43))
    sampler2 = DiffusionSampler(model2)
    e_t2 = jax.block_until_ready(
        sampler2.get_eps(x2, t, c2, uncond_scale=uncond_scale, uncond_cond=u2))
    e_ref2 = ref_cfg(model2, x2, t, c2, u2, uncond_scale, True)
    assert jnp.allclose(e_t2, e_ref2, atol=2e-3, rtol=2e-3)

    print("KERNEL_OK")
</pallas_src>

<mosaic_0001>
module attributes {stable_mosaic.version = 11 : i64} {
  func.func @_eps_kernel_vpu(%arg0: i32, %arg1: i32, %arg2: memref<1x4x256xbf16, #tpu.memory_space<vmem>>, %arg3: memref<4x4xf32, #tpu.memory_space<smem>>, %arg4: memref<1x4x128xf32, #tpu.memory_space<vmem>>, %arg5: memref<1x4x256xf32, #tpu.memory_space<vmem>>) attributes {dimension_semantics = [#tpu.dimension_semantics<parallel>, #tpu.dimension_semantics<parallel>], iteration_bounds = array<i64: 2, 1>, scalar_prefetch = 0 : i64, scratch_operands = 0 : i64, tpu.core_type = #tpu.core_type<tc>, window_params = [{transform_indices = @transform_0, window_bounds = array<i64: 1, 4, 256>}, {transform_indices = @transform_1, window_bounds = array<i64: 4, 4>}, {transform_indices = @transform_2, window_bounds = array<i64: 1, 4, 128>}, {transform_indices = @transform_3, window_bounds = array<i64: 1, 4, 256>}]} {
    %c0 = arith.constant 0 : index
    %c0_0 = arith.constant 0 : index
    %c0_1 = arith.constant 0 : index
    %0 = vector.load %arg2[%c0, %c0_0, %c0_1] : memref<1x4x256xbf16, #tpu.memory_space<vmem>>, vector<1x4x256xbf16>
    %1 = vector.shape_cast %0 : vector<1x4x256xbf16> to vector<4x256xbf16>
    %2 = arith.extf %1 : vector<4x256xbf16> to vector<4x256xf32>
    %c0_2 = arith.constant 0 : index
    %c0_3 = arith.constant 0 : index
    %3 = memref.load %arg3[%c0_2, %c0_3] : memref<4x4xf32, #tpu.memory_space<smem>>
    %4 = vector.extract_strided_slice %2 {offsets = [0, 0], sizes = [1, 256], strides = [1, 1]} : vector<4x256xf32> to vector<1x256xf32>
    %5 = vector.broadcast %3 : f32 to vector<1x256xf32>
    %6 = arith.mulf %5, %4 : vector<1x256xf32>
    %c0_4 = arith.constant 0 : index
    %c1 = arith.constant 1 : index
    %7 = memref.load %arg3[%c0_4, %c1] : memref<4x4xf32, #tpu.memory_space<smem>>
    %8 = vector.extract_strided_slice %2 {offsets = [1, 0], sizes = [1, 256], strides = [1, 1]} : vector<4x256xf32> to vector<1x256xf32>
    %9 = vector.broadcast %7 : f32 to vector<1x256xf32>
    %10 = arith.mulf %9, %8 : vector<1x256xf32>
    %11 = arith.addf %6, %10 : vector<1x256xf32>
    %c0_5 = arith.constant 0 : index
    %c2 = arith.constant 2 : index
    %12 = memref.load %arg3[%c0_5, %c2] : memref<4x4xf32, #tpu.memory_space<smem>>
    %13 = vector.extract_strided_slice %2 {offsets = [2, 0], sizes = [1, 256], strides = [1, 1]} : vector<4x256xf32> to vector<1x256xf32>
    %14 = vector.broadcast %12 : f32 to vector<1x256xf32>
    %15 = arith.mulf %14, %13 : vector<1x256xf32>
    %16 = arith.addf %11, %15 : vector<1x256xf32>
    %c0_6 = arith.constant 0 : index
    %c3 = arith.constant 3 : index
    %17 = memref.load %arg3[%c0_6, %c3] : memref<4x4xf32, #tpu.memory_space<smem>>
    %18 = vector.extract_strided_slice %2 {offsets = [3, 0], sizes = [1, 256], strides = [1, 1]} : vector<4x256xf32> to vector<1x256xf32>
    %19 = vector.broadcast %17 : f32 to vector<1x256xf32>
    %20 = arith.mulf %19, %18 : vector<1x256xf32>
    %21 = arith.addf %16, %20 : vector<1x256xf32>
    %c1_7 = arith.constant 1 : index
    %c0_8 = arith.constant 0 : index
    %22 = memref.load %arg3[%c1_7, %c0_8] : memref<4x4xf32, #tpu.memory_space<smem>>
    %23 = vector.extract_strided_slice %2 {offsets = [0, 0], sizes = [1, 256], strides = [1, 1]} : vector<4x256xf32> to vector<1x256xf32>
    %24 = vector.broadcast %22 : f32 to vector<1x256xf32>
    %25 = arith.mulf %24, %23 : vector<1x256xf32>
    %c1_9 = arith.constant 1 : index
    %c1_10 = arith.constant 1 : index
    %26 = memref.load %arg3[%c1_9, %c1_10] : memref<4x4xf32, #tpu.memory_space<smem>>
    %27 = vector.extract_strided_slice %2 {offsets = [1, 0], sizes = [1, 256], strides = [1, 1]} : vector<4x256xf32> to vector<1x256xf32>
    %28 = vector.broadcast %26 : f32 to vector<1x256xf32>
    %29 = arith.mulf %28, %27 : vector<1x256xf32>
    %30 = arith.addf %25, %29 : vector<1x256xf32>
    %c1_11 = arith.constant 1 : index
    %c2_12 = arith.constant 2 : index
    %31 = memref.load %arg3[%c1_11, %c2_12] : memref<4x4xf32, #tpu.memory_space<smem>>
    %32 = vector.extract_strided_slice %2 {offsets = [2, 0], sizes = [1, 256], strides = [1, 1]} : vector<4x256xf32> to vector<1x256xf32>
    %33 = vector.broadcast %31 : f32 to vector<1x256xf32>
    %34 = arith.mulf %33, %32 : vector<1x256xf32>
    %35 = arith.addf %30, %34 : vector<1x256xf32>
    %c1_13 = arith.constant 1 : index
    %c3_14 = arith.constant 3 : index
    %36 = memref.load %arg3[%c1_13, %c3_14] : memref<4x4xf32, #tpu.memory_space<smem>>
    %37 = vector.extract_strided_slice %2 {offsets = [3, 0], sizes = [1, 256], strides = [1, 1]} : vector<4x256xf32> to vector<1x256xf32>
    %38 = vector.broadcast %36 : f32 to vector<1x256xf32>
    %39 = arith.mulf %38, %37 : vector<1x256xf32>
    %40 = arith.addf %35, %39 : vector<1x256xf32>
    %c2_15 = arith.constant 2 : index
    %c0_16 = arith.constant 0 : index
    %41 = memref.load %arg3[%c2_15, %c0_16] : memref<4x4xf32, #tpu.memory_space<smem>>
    %42 = vector.extract_strided_slice %2 {offsets = [0, 0], sizes = [1, 256], strides = [1, 1]} : vector<4x256xf32> to vector<1x256xf32>
    %43 = vector.broadcast %41 : f32 to vector<1x256xf32>
    %44 = arith.mulf %43, %42 : vector<1x256xf32>
    %c2_17 = arith.constant 2 : index
    %c1_18 = arith.constant 1 : index
    %45 = memref.load %arg3[%c2_17, %c1_18] : memref<4x4xf32, #tpu.memory_space<smem>>
    %46 = vector.extract_strided_slice %2 {offsets = [1, 0], sizes = [1, 256], strides = [1, 1]} : vector<4x256xf32> to vector<1x256xf32>
    %47 = vector.broadcast %45 : f32 to vector<1x256xf32>
    %48 = arith.mulf %47, %46 : vector<1x256xf32>
    %49 = arith.addf %44, %48 : vector<1x256xf32>
    %c2_19 = arith.constant 2 : index
    %c2_20 = arith.constant 2 : index
    %50 = memref.load %arg3[%c2_19, %c2_20] : memref<4x4xf32, #tpu.memory_space<smem>>
    %51 = vector.extract_strided_slice %2 {offsets = [2, 0], sizes = [1, 256], strides = [1, 1]} : vector<4x256xf32> to vector<1x256xf32>
    %52 = vector.broadcast %50 : f32 to vector<1x256xf32>
    %53 = arith.mulf %52, %51 : vector<1x256xf32>
    %54 = arith.addf %49, %53 : vector<1x256xf32>
    %c2_21 = arith.constant 2 : index
    %c3_22 = arith.constant 3 : index
    %55 = memref.load %arg3[%c2_21, %c3_22] : memref<4x4xf32, #tpu.memory_space<smem>>
    %56 = vector.extract_strided_slice %2 {offsets = [3, 0], sizes = [1, 256], strides = [1, 1]} : vector<4x256xf32> to vector<1x256xf32>
    %57 = vector.broadcast %55 : f32 to vector<1x256xf32>
    %58 = arith.mulf %57, %56 : vector<1x256xf32>
    %59 = arith.addf %54, %58 : vector<1x256xf32>
    %c3_23 = arith.constant 3 : index
    %c0_24 = arith.constant 0 : index
    %60 = memref.load %arg3[%c3_23, %c0_24] : memref<4x4xf32, #tpu.memory_space<smem>>
    %61 = vector.extract_strided_slice %2 {offsets = [0, 0], sizes = [1, 256], strides = [1, 1]} : vector<4x256xf32> to vector<1x256xf32>
    %62 = vector.broadcast %60 : f32 to vector<1x256xf32>
    %63 = arith.mulf %62, %61 : vector<1x256xf32>
    %c3_25 = arith.constant 3 : index
    %c1_26 = arith.constant 1 : index
    %64 = memref.load %arg3[%c3_25, %c1_26] : memref<4x4xf32, #tpu.memory_space<smem>>
    %65 = vector.extract_strided_slice %2 {offsets = [1, 0], sizes = [1, 256], strides = [1, 1]} : vector<4x256xf32> to vector<1x256xf32>
    %66 = vector.broadcast %64 : f32 to vector<1x256xf32>
    %67 = arith.mulf %66, %65 : vector<1x256xf32>
    %68 = arith.addf %63, %67 : vector<1x256xf32>
    %c3_27 = arith.constant 3 : index
    %c2_28 = arith.constant 2 : index
    %69 = memref.load %arg3[%c3_27, %c2_28] : memref<4x4xf32, #tpu.memory_space<smem>>
    %70 = vector.extract_strided_slice %2 {offsets = [2, 0], sizes = [1, 256], strides = [1, 1]} : vector<4x256xf32> to vector<1x256xf32>
    %71 = vector.broadcast %69 : f32 to vector<1x256xf32>
    %72 = arith.mulf %71, %70 : vector<1x256xf32>
    %73 = arith.addf %68, %72 : vector<1x256xf32>
    %c3_29 = arith.constant 3 : index
    %c3_30 = arith.constant 3 : index
    %74 = memref.load %arg3[%c3_29, %c3_30] : memref<4x4xf32, #tpu.memory_space<smem>>
    %75 = vector.extract_strided_slice %2 {offsets = [3, 0], sizes = [1, 256], strides = [1, 1]} : vector<4x256xf32> to vector<1x256xf32>
    %76 = vector.broadcast %74 : f32 to vector<1x256xf32>
    %77 = arith.mulf %76, %75 : vector<1x256xf32>
    %78 = arith.addf %73, %77 : vector<1x256xf32>
    %79 = tpu.concatenate %21, %40, %59, %78 in 0 : vector<1x256xf32>, vector<1x256xf32>, vector<1x256xf32>, vector<1x256xf32> -> vector<4x256xf32>
    %c0_31 = arith.constant 0 : index
    %c0_32 = arith.constant 0 : index
    %c0_33 = arith.constant 0 : index
    %80 = vector.load %arg4[%c0_31, %c0_32, %c0_33] : memref<1x4x128xf32, #tpu.memory_space<vmem>>, vector<1x4x128xf32>
    %81 = vector.shape_cast %80 : vector<1x4x128xf32> to vector<4x128xf32>
    %82 = vector.extract_strided_slice %79 {offsets = [0, 0], sizes = [4, 128], strides = [1, 1]} : vector<4x256xf32> to vector<4x128xf32>
    %83 = arith.addf %82, %81 : vector<4x128xf32>
    %c0_34 = arith.constant 0 : index
    %c0_35 = arith.constant 0 : index
    %c0_36 = arith.constant 0 : index
    %84 = vector.load %arg5[%c0_34, %c0_35, %c0_36] : memref<1x4x256xf32, #tpu.memory_space<vmem>>, vector<1x4x128xf32>
    %85 = vector.shape_cast %84 : vector<1x4x128xf32> to vector<4x128xf32>
    %86 = vector.shape_cast %83 : vector<4x128xf32> to vector<1x4x128xf32>
    tpu.vector_store %arg5[%c0_34, %c0_35, %c0_36], %86 {strides = array<i32>} : memref<1x4x256xf32, #tpu.memory_space<vmem>>, vector<1x4x128xf32>,
    %87 = vector.extract_strided_slice %79 {offsets = [0, 128], sizes = [4, 128], strides = [1, 1]} : vector<4x256xf32> to vector<4x128xf32>
    %88 = arith.addf %87, %81 : vector<4x128xf32>
    %c0_37 = arith.constant 0 : index
    %c0_38 = arith.constant 0 : index
    %c128 = arith.constant 128 : index
    %89 = vector.load %arg5[%c0_37, %c0_38, %c128] : memref<1x4x256xf32, #tpu.memory_space<vmem>>, vector<1x4x128xf32>
    %90 = vector.shape_cast %89 : vector<1x4x128xf32> to vector<4x128xf32>
    %91 = vector.shape_cast %88 : vector<4x128xf32> to vector<1x4x128xf32>
    tpu.vector_store %arg5[%c0_37, %c0_38, %c128], %91 {strides = array<i32>} : memref<1x4x256xf32, #tpu.memory_space<vmem>>, vector<1x4x128xf32>,
    return
  }
  func.func @transform_0(%arg0: i32, %arg1: i32) -> (i32, i32, i32) {
    %c0_i32 = arith.constant 0 : i32
    %c0_i32_0 = arith.constant 0 : i32
    return %arg0, %c0_i32, %arg1 : i32, i32, i32
  }
  func.func @transform_1(%arg0: i32, %arg1: i32) -> (i32, i32) {
    %c0_i32 = arith.constant 0 : i32
    %c0_i32_0 = arith.constant 0 : i32
    %c0_i32_1 = arith.constant 0 : i32
    return %c0_i32, %c0_i32_0 : i32, i32
  }
  func.func @transform_2(%arg0: i32, %arg1: i32) -> (i32, i32, i32) {
    %c0_i32 = arith.constant 0 : i32
    %c0_i32_0 = arith.constant 0 : i32
    %c0_i32_1 = arith.constant 0 : i32
    return %arg0, %c0_i32, %c0_i32_0 : i32, i32, i32
  }
  func.func @transform_3(%arg0: i32, %arg1: i32) -> (i32, i32, i32) {
    %c0_i32 = arith.constant 0 : i32
    %c0_i32_0 = arith.constant 0 : i32
    return %arg0, %c0_i32, %arg1 : i32, i32, i32
  }
}

</mosaic_0001>

<llo_original>
// kernel: _eps_guided_impl.1
$region0: #{_eps_guided_impl.1}
  #allocation0 [shape = 'u32[]', space=smem, size = 0x4, offset = 0x4, fixed_abs, tag = 'smem constant byte address 0x4 - core index']
  #allocation1 [shape = 'u32[144,128]{1,0:T(1,128)}', space=vmem, size = 0x12000, scoped, tag = 'internal scratch']
  %s0 = inlined_call_operand.vmem [shape: bf16[2,4,256], index: 0, kind: input, shape index: {}]
  %s1 = inlined_call_operand.vmem [shape: f32[4,4], index: 1, kind: input, shape index: {}]
  %s2 = inlined_call_operand.vmem [shape: f32[2,4,128], index: 2, kind: input, shape index: {}]
  %s3 = inlined_call_operand.vmem [shape: f32[2,4,256], index: 3, kind: output, shape index: {}]
  %s4 = sld [smem:[#allocation0]]
  $region49: #{_eps_guided_impl.1} parent=0
    _
  %s6 = ssub.s32 1, %s4
  %s7 = scalar_select 0, %s6, %s4
  $region1: #{_eps_guided_impl.1} parent=0
    #allocation2 [shape = 'u8[2048]{0}', space=smem, size = 0x800, scoped, tag = 'input window, operand 1, single buffered']
    #allocation3 [shape = 's32[2]{0}', space=sflag, size = 0x8, scoped, tag = 'scoped memory for _eps_guided_impl.1']
    %8 = vsyncpa [#allocation3], 0
    loop: start=0, step=1, limit=4
    $region2: #{_eps_guided_impl.1} parent=1 // loop_pre_header
      _
    $region3: #{_eps_guided_impl.1} parent=1 // loop_header
      %s10 = sphi 0, %s14
      %p11 = scmp.ge.s32.totalorder %s10, 4
      %s17 = sphi 0, %s29
      %s18 = sphi 0, %s25
      %s19 = sphi 0, %s17
      %s20 = sphi 0, %s18
      %s21 = sphi 0, %s19
      %s22 = sphi 0, %s20
      %s34 = sphi 0, %s36
      %s37 = sphi 0, %s34
      %s38 = sphi 0, %s37
      %s54 = sphi 0, %s38
      %s58 = sphi 0, %s58
      %s60 = sphi 0, %s58
      %s61 = sphi 0, %s60
      %s75 = sphi 0, %s61
      %s81 = sphi 0, %s83
      %s84 = sphi 0, %s81
      %s85 = sphi 0, %s84
      %s101 = sphi 0, %s85
      %s109 = sphi 0, %s111
      %s112 = sphi 0, %s109
      %s113 = sphi 0, %s112
      %s129 = sphi 0, %s113
    $region4: #{_eps_guided_impl.1} parent=1 // loop_header_branch
      %13 = sbr.rel (%p11) target = $region8
    $region5: #{_eps_guided_impl.1} parent=1 // loop_body
      %s15 = ssub.s32 %s10, 1
      %s16 = ssub.s32 %s10, 2
      %s23 = sadd.s32 1, %s18
      %p24 = scmp.ge.s32.totalorder %s23, 1
      %s25 = scalar_select %p24, 0, %s23
      %s26 = sadd.s32 1, %s17
      %s27 = scalar_select %p24, %s26, %s17
      %p28 = scmp.ge.s32.totalorder %s27, 2
      %s29 = scalar_select %p28, 0, %s27
      %s30 = ssub.s32 %s17, %s29
      %s31 = ssub.s32 %s18, %s25
      %s32 = sor.u32 %s30, %s31
      %p33 = scmp.eq.s32.totalorder %s32, 0
      %s35 = sadd.s32 %s34, 1
      %s36 = scalar_select %p33, %s34, %s35
      %p39 = pneg %p33
      %p40 = scmp.eq.s32.totalorder %s10, 1
      %p41 = por %p39, %p40
      %p42 = scmp.ne.s32.totalorder %s34, %s37
      %p43 = scmp.eq.s32.totalorder %s10, 0
      %p44 = por %p42, %p43
      %p45 = scmp.ne.s32.totalorder %s34, %s37
      %p46 = scmp.eq.s32.totalorder %s15, 1
      %p47 = por %p45, %p46
      %p48 = scmp.ne.s32.totalorder %s37, %s38
      %p49 = scmp.eq.s32.totalorder %s15, 0
      %p50 = por %p48, %p49
      %p51 = scmp.ne.s32.totalorder %s37, %s38
      %p52 = scmp.eq.s32.totalorder %s16, 1
      %p53 = por %p51, %p52
      %p55 = scmp.ne.s32.totalorder %s38, %s54
      %p56 = scmp.eq.s32.totalorder %s16, 0
      %p57 = por %p55, %p56
      %s59 = sadd.s32 %s58, 1
      %p62 = scmp.eq.s32.totalorder %s10, 1
      %p63 = scmp.ne.s32.totalorder %s58, %s60
      %p64 = scmp.eq.s32.totalorder %s10, 0
      %p65 = por %p63, %p64
      %p66 = scmp.ne.s32.totalorder %s58, %s60
      %p67 = scmp.eq.s32.totalorder %s15, 1
      %p68 = por %p66, %p67
      %p69 = scmp.ne.s32.totalorder %s60, %s61
      %p70 = scmp.eq.s32.totalorder %s15, 0
      %p71 = por %p69, %p70
      %p72 = scmp.ne.s32.totalorder %s60, %s61
      %p73 = scmp.eq.s32.totalorder %s16, 1
      %p74 = por %p72, %p73
      %p76 = scmp.ne.s32.totalorder %s61, %s75
      %p77 = scmp.eq.s32.totalorder %s16, 0
      %p78 = por %p76, %p77
      %s79 = ssub.s32 %s17, %s29
      %p80 = scmp.eq.s32.totalorder %s79, 0
      %s82 = sadd.s32 %s81, 1
      %s83 = scalar_select %p80, %s81, %s82
      %p86 = pneg %p80
      %p87 = scmp.eq.s32.totalorder %s10, 1
      %p88 = por %p86, %p87
      %p89 = scmp.ne.s32.totalorder %s81, %s84
      %p90 = scmp.eq.s32.totalorder %s10, 0
      %p91 = por %p89, %p90
      %p92 = scmp.ne.s32.totalorder %s81, %s84
      %p93 = scmp.eq.s32.totalorder %s15, 1
      %p94 = por %p92, %p93
      %p95 = scmp.ne.s32.totalorder %s84, %s85
      %p96 = scmp.eq.s32.totalorder %s15, 0
      %p97 = por %p95, %p96
      %p98 = scmp.ne.s32.totalorder %s84, %s85
      %p99 = scmp.eq.s32.totalorder %s16, 1
      %p100 = por %p98, %p99
      %p102 = scmp.ne.s32.totalorder %s85, %s101
      %p103 = scmp.eq.s32.totalorder %s16, 0
      %p104 = por %p102, %p103
      %s105 = ssub.s32 %s17, %s29
      %s106 = ssub.s32 %s18, %s25
      %s107 = sor.u32 %s105, %s106
      %p108 = scmp.eq.s32.totalorder %s107, 0
      %s110 = sadd.s32 %s109, 1
      %s111 = scalar_select %p108, %s109, %s110
      %p114 = pneg %p108
      %p115 = scmp.eq.s32.totalorder %s10, 1
      %p116 = por %p114, %p115
      %p117 = scmp.ne.s32.totalorder %s109, %s112
      %p118 = scmp.eq.s32.totalorder %s10, 0
      %p119 = por %p117, %p118
      %p120 = scmp.ne.s32.totalorder %s109, %s112
      %p121 = scmp.eq.s32.totalorder %s15, 1
      %p122 = por %p120, %p121
      %p123 = scmp.ne.s32.totalorder %s112, %s113
      %p124 = scmp.eq.s32.totalorder %s15, 0
      %p125 = por %p123, %p124
      %p126 = scmp.ne.s32.totalorder %s112, %s113
      %p127 = scmp.eq.s32.totalorder %s16, 1
      %p128 = por %p126, %p127
      %p130 = scmp.ne.s32.totalorder %s113, %s129
      %p131 = scmp.eq.s32.totalorder %s16, 0
      %p132 = por %p130, %p131
      %p133 = scmp.le.s32.totalorder 1, %s10
      %p134 = scmp.lt.s32.totalorder %s10, 3
      %p135 = pnand %p133, %p134
      %p136 = pneg %p135
      // Predicated region
      $region9: #{_eps_guided_impl.1} parent=5 // pred_check
        _
      $region10: #{_eps_guided_impl.1} parent=5 // pred_check_branch
        %138 = sbr.rel (%p135) target = $region12
      $region11: #{_eps_guided_impl.1} parent=5 // pred_region
        %s139 = ssub.s32 %s10, 1
        // Predicated region
        $region13: #{_eps_guided_impl.1} parent=11 // pred_check
          %p140 = pneg %p71
        $region14: #{_eps_guided_impl.1} parent=11 // pred_check_branch
          %142 = sbr.rel (%p140) target = $region16
        $region15: #{_eps_guided_impl.1} parent=11 // pred_region
          %s144 = ssub.s32 64, 64
          %145 = vsyncadd [#allocation3], %s144
          %s147 = sshll.u32 %s1, 4
          %s148 = int_to_ptr.vmem [resolvable:$true] %s147
          %150 = dma.vmem_to_smem %s148, 64, [#allocation2], [#allocation3]
        $region16: #{_eps_guided_impl.1} parent=11 // pred_fallthru
          _
      $region12: #{_eps_guided_impl.1} parent=5 // pred_fallthru
        _
      %p151 = scmp.lt.s32.totalorder %s10, 2
      // Predicated region
      $region17: #{_eps_guided_impl.1} parent=5 // pred_check
        %p152 = pneg %p151
      $region18: #{_eps_guided_impl.1} parent=5 // pred_check_branch
        %154 = sbr.rel (%p152) target = $region20
      $region19: #{_eps_guided_impl.1} parent=5 // pred_region
        // Predicated region
        $region21: #{_eps_guided_impl.1} parent=19 // pred_check
          %p155 = pneg %p44
        $region22: #{_eps_guided_impl.1} parent=19 // pred_check_branch
          %157 = sbr.rel (%p155) target = $region24
        $region23: #{_eps_guided_impl.1} parent=19 // pred_region
          %s158 = smul.u32 2, %s18
          %p159 = scmp.lt.s32.totalorder %s17, 1
          %s160 = scalar_select %p159, %s17, 1
          %p161 = scmp.lt.s32.totalorder %s158, 1
          %s162 = scalar_select %p161, %s158, 1
          %s163 = smul.addr %s160, 2
          %s164 = sadd.s32 %s162, %s163
          %s165 = smul.addr %s164, 2
          %s166 = scalar_lea.vmem %s0, %s165
          %s167 = smul.u32 2, %s18
        $region24: #{_eps_guided_impl.1} parent=19 // pred_fallthru
          _
        // Predicated region
        $region25: #{_eps_guided_impl.1} parent=19 // pred_check
          %p168 = pneg %p91
        $region26: #{_eps_guided_impl.1} parent=19 // pred_check_branch
          %170 = sbr.rel (%p168) target = $region28
        $region27: #{_eps_guided_impl.1} parent=19 // pred_region
          %p171 = scmp.lt.s32.totalorder %s17, 1
          %s172 = scalar_select %p171, %s17, 1
          %s173 = smul.addr %s172, 4
          %s174 = scalar_lea.vmem %s2, %s173
        $region28: #{_eps_guided_impl.1} parent=19 // pred_fallthru
          _
      $region20: #{_eps_guided_impl.1} parent=5 // pred_fallthru
        _
      %p175 = scmp.le.s32.totalorder 1, %s10
      %p176 = scmp.lt.s32.totalorder %s10, 3
      %p177 = pnand %p175, %p176
      %p178 = pneg %p177
      // Predicated region
      $region29: #{_eps_guided_impl.1} parent=5 // pred_check
        _
      $region30: #{_eps_guided_impl.1} parent=5 // pred_check_branch
        %180 = sbr.rel (%p177) target = $region32
      $region31: #{_eps_guided_impl.1} parent=5 // pred_region
        %s181 = ssub.s32 %s10, 1
        // Predicated region
        $region33: #{_eps_guided_impl.1} parent=31 // pred_check
          %p182 = pneg %p71
        $region34: #{_eps_guided_impl.1} parent=31 // pred_check_branch
          %184 = sbr.rel (%p182) target = $region36
        $region35: #{_eps_guided_impl.1} parent=31 // pred_region
          %185 = dma.done [#allocation3], 64
        $region36: #{_eps_guided_impl.1} parent=31 // pred_fallthru
          _
        %186 = sfence
        %s187 = smul.u32 2, %s20
        %p188 = scmp.lt.s32.totalorder %s19, 1
        %s189 = scalar_select %p188, %s19, 1
        %p190 = scmp.lt.s32.totalorder %s187, 1
        %s191 = scalar_select %p190, %s187, 1
        %s192 = smul.addr %s189, 2
        %s193 = sadd.s32 %s191, %s192
        %s194 = smul.addr %s193, 2
        %s195 = scalar_lea.vmem %s0, %s194
        %p196 = pneg %p50
        %p197 = pneg %p47
        %p198 = pneg %p71
        %p199 = pneg %p68
        %p200 = scmp.lt.s32.totalorder %s19, 1
        %s201 = scalar_select %p200, %s19, 1
        %s202 = smul.addr %s201, 4
        %s203 = scalar_lea.vmem %s2, %s202
        %p204 = pneg %p97
        %p205 = pneg %p94
        %p206 = pneg %p125
        %p207 = pneg %p122
        %s208 = smul.u32 2, %s20
        %p209 = scmp.lt.s32.totalorder %s19, 1
        %s210 = scalar_select %p209, %s19, 1
        %p211 = scmp.lt.s32.totalorder %s208, 1
        %s212 = scalar_select %p211, %s208, 1
        %s213 = smul.addr %s210, 2
        %s214 = sadd.s32 %s212, %s213
        %s215 = smul.addr %s214, 4
        %s216 = scalar_lea.vmem %s3, %s215
        %s217 = smul.u32 2, %s20
        %p218 = scmp.lt.s32.totalorder %s19, 1
        %s219 = scalar_select %p218, %s19, 1
        %p220 = scmp.lt.s32.totalorder %s217, 1
        %s221 = scalar_select %p220, %s217, 1
        %s222 = smul.addr %s219, 2
        %s223 = sadd.s32 %s221, %s222
        %s224 = smul.addr %s223, 2
        %s225 = scalar_lea.vmem %s0, %s224
        %s226 = smul.u32 2, %s20
        %p227 = scmp.lt.s32.totalorder %s19, 1
        %s228 = scalar_select %p227, %s19, 1
        %s229 = smul.addr %s228, 4
        %s230 = scalar_lea.vmem %s2, %s229
        %s231 = smul.u32 2, %s20
        %p232 = scmp.lt.s32.totalorder %s19, 1
        %s233 = scalar_select %p232, %s19, 1
        %p234 = scmp.lt.s32.totalorder %s231, 1
        %s235 = scalar_select %p234, %s231, 1
        %s236 = smul.addr %s233, 2
        %s237 = sadd.s32 %s235, %s236
        %s238 = smul.addr %s237, 4
        %s239 = scalar_lea.vmem %s3, %s238
        %s240 = smul.u32 2, %s20
        %v241 = vld [vmem:[%s225] sm:$0xf]
        %v242 = vunpack.c.l.bf16 %v241
        %s243 = sld [smem:[#allocation2]]
        %v244 = vstv %s243
        %v245 = vmul.f32 %v244, %v242
        %s246 = sld [smem:[#allocation2 + $0x1]]
        %v247 = vstv %s246
        %v248 = vmul.f32 %v247, %v242
        %v250 = vrot.slane %v248, 5
        %v251 = vrot.slane %v250, 4
        %v253 = vadd.f32 %v245, %v251
        %s254 = sld [smem:[#allocation2 + $0x2]]
        %v255 = vstv %s254
        %v256 = vmul.f32 %v255, %v242
        %v258 = vrot.slane %v256, 6
        %v259 = vrot.slane %v258, 4
        %v261 = vadd.f32 %v253, %v259
        %s262 = sld [smem:[#allocation2 + $0x3]]
        %v263 = vstv %s262
        %v264 = vmul.f32 %v263, %v242
        %v266 = vrot.slane %v264, 7
        %v267 = vrot.slane %v266, 4
        %v269 = vadd.f32 %v261, %v267
        %s270 = sld [smem:[#allocation2 + $0x80]]
        %v271 = vstv %s270
        %v272 = vmul.f32 %v271, %v242
        %s273 = sld [smem:[#allocation2 + $0x81]]
        %v274 = vstv %s273
        %v275 = vmul.f32 %v274, %v242
        %v277 = vrot.slane %v275, 5
        %v278 = vrot.slane %v277, 4
        %v280 = vadd.f32 %v272, %v278
        %s281 = sld [smem:[#allocation2 + $0x82]]
        %v282 = vstv %s281
        %v283 = vmul.f32 %v282, %v242
        %v285 = vrot.slane %v283, 6
        %v286 = vrot.slane %v285, 4
        %v288 = vadd.f32 %v280, %v286
        %s289 = sld [smem:[#allocation2 + $0x83]]
        %v290 = vstv %s289
        %v291 = vmul.f32 %v290, %v242
        %v293 = vrot.slane %v291, 7
        %v294 = vrot.slane %v293, 4
        %v296 = vadd.f32 %v288, %v294
        %s297 = sld [smem:[#allocation2 + $0x100]]
        %v298 = vstv %s297
        %v299 = vmul.f32 %v298, %v242
        %s300 = sld [smem:[#allocation2 + $0x101]]
        %v301 = vstv %s300
        %v302 = vmul.f32 %v301, %v242
        %v304 = vrot.slane %v302, 5
        %v305 = vrot.slane %v304, 4
        %v307 = vadd.f32 %v299, %v305
        %s308 = sld [smem:[#allocation2 + $0x102]]
        %v309 = vstv %s308
        %v310 = vmul.f32 %v309, %v242
        %v312 = vrot.slane %v310, 6
        %v313 = vrot.slane %v312, 4
        %v315 = vadd.f32 %v307, %v313
        %s316 = sld [smem:[#allocation2 + $0x103]]
        %v317 = vstv %s316
        %v318 = vmul.f32 %v317, %v242
        %v320 = vrot.slane %v318, 7
        %v321 = vrot.slane %v320, 4
        %v323 = vadd.f32 %v315, %v321
        %s324 = sld [smem:[#allocation2 + $0x180]]
        %v325 = vstv %s324
        %v326 = vmul.f32 %v325, %v242
        %s327 = sld [smem:[#allocation2 + $0x181]]
        %v328 = vstv %s327
        %v329 = vmul.f32 %v328, %v242
        %v331 = vrot.slane %v329, 5
        %v332 = vrot.slane %v331, 4
        %v334 = vadd.f32 %v326, %v332
        %s335 = sld [smem:[#allocation2 + $0x182]]
        %v336 = vstv %s335
        %v337 = vmul.f32 %v336, %v242
        %v339 = vrot.slane %v337, 6
        %v340 = vrot.slane %v339, 4
        %v342 = vadd.f32 %v334, %v340
        %s343 = sld [smem:[#allocation2 + $0x183]]
        %v344 = vstv %s343
        %v345 = vmul.f32 %v344, %v242
        %v347 = vrot.slane %v345, 7
        %v348 = vrot.slane %v347, 4
        %v350 = vadd.f32 %v342, %v348
        %v352 = vlaneseq
        %v353 = vshrl.u32 %v352, 7
        %v354 = vsub.s32 0, %v353
        %v355 = vrot.slane %v269, %v354
        %v356 = vlaneseq
        %v357 = vshrl.u32 %v356, 7
        %v358 = vsub.s32 4, %v357
        %v359 = vrot.slane %v269, %v358
        %v363 = vlaneseq
        %v364 = vshrl.u32 %v363, 7
        %v365 = vsub.s32 0, %v364
        %v366 = vrot.slane %v296, %v365
        %v367 = vlaneseq
        %v368 = vshrl.u32 %v367, 7
        %v369 = vsub.s32 4, %v368
        %v370 = vrot.slane %v296, %v369
        %v374 = vlaneseq
        %v375 = vshrl.u32 %v374, 7
        %v376 = vsub.s32 0, %v375
        %v377 = vrot.slane %v323, %v376
        %v378 = vlaneseq
        %v379 = vshrl.u32 %v378, 7
        %v380 = vsub.s32 4, %v379
        %v381 = vrot.slane %v323, %v380
        %v385 = vlaneseq
        %v386 = vshrl.u32 %v385, 7
        %v387 = vsub.s32 0, %v386
        %v388 = vrot.slane %v350, %v387
        %v389 = vlaneseq
        %v390 = vshrl.u32 %v389, 7
        %v391 = vsub.s32 4, %v390
        %v392 = vrot.slane %v350, %v391
        %vm395 = vcmask 1040384
        %v396 = vsel %vm395, %v355, %v366
        %v397 = vsel %vm395, %v359, %v370
        %vm398 = vcmask 1041408
        %v399 = vsel %vm398, %v396, %v377
        %v400 = vsel %vm398, %v397, %v381
        %vm401 = vcmask 1042432
        %v402 = vsel %vm401, %v399, %v388
        %v403 = vsel %vm401, %v400, %v392
        %v404 = vld [vmem:[%s230] sm:$0xf]
        %v405 = vadd.f32 %v402, %v404
        %406 = vst [vmem:[%s239] sm:$0xf] %v405
        %v407 = vadd.f32 %v403, %v404
        %408 = vst [vmem:[%s239 + $0x4] sm:$0xf] %v407
        %s409 = smul.u32 2, %s20
        %p410 = scmp.lt.s32.totalorder %s19, 1
        %s411 = scalar_select %p410, %s19, 1
        %p412 = scmp.lt.s32.totalorder %s409, 1
        %s413 = scalar_select %p412, %s409, 1
        %s414 = smul.addr %s411, 2
        %s415 = sadd.s32 %s413, %s414
        %s416 = smul.addr %s415, 4
        %s417 = scalar_lea.vmem %s3, %s416
        // Predicated region
        $region37: #{_eps_guided_impl.1} parent=31 // pred_check
          %p418 = pneg %p122
        $region38: #{_eps_guided_impl.1} parent=31 // pred_check_branch
          %420 = sbr.rel (%p418) target = $region40
        $region39: #{_eps_guided_impl.1} parent=31 // pred_region
          %s421 = smul.u32 2, %s20
        $region40: #{_eps_guided_impl.1} parent=31 // pred_fallthru
          _
      $region32: #{_eps_guided_impl.1} parent=5 // pred_fallthru
        _
      %p422 = scmp.le.s32.totalorder 2, %s10
      // Predicated region
      $region41: #{_eps_guided_impl.1} parent=5 // pred_check
        %p423 = pneg %p422
      $region42: #{_eps_guided_impl.1} parent=5 // pred_check_branch
        %425 = sbr.rel (%p423) target = $region44
      $region43: #{_eps_guided_impl.1} parent=5 // pred_region
        %s426 = ssub.s32 %s10, 2
        // Predicated region
        $region45: #{_eps_guided_impl.1} parent=43 // pred_check
          %p427 = pneg %p128
        $region46: #{_eps_guided_impl.1} parent=43 // pred_check_branch
          %429 = sbr.rel (%p427) target = $region48
        $region47: #{_eps_guided_impl.1} parent=43 // pred_region
          %s430 = smul.u32 2, %s22
          %p431 = scmp.lt.s32.totalorder %s21, 1
          %s432 = scalar_select %p431, %s21, 1
          %p433 = scmp.lt.s32.totalorder %s430, 1
          %s434 = scalar_select %p433, %s430, 1
          %s435 = smul.addr %s432, 2
          %s436 = sadd.s32 %s434, %s435
          %s437 = smul.addr %s436, 4
          %s438 = scalar_lea.vmem %s3, %s437
        $region48: #{_eps_guided_impl.1} parent=43 // pred_fallthru
          _
      $region44: #{_eps_guided_impl.1} parent=5 // pred_fallthru
        _
    $region6: #{_eps_guided_impl.1} parent=1 // loop_footer
      %s14 = sadd.s32 1, %s10
    $region7: #{_eps_guided_impl.1} parent=1 // loop_footer_branch
      %9 = sbr.rel target = $region3
    $region8: #{_eps_guided_impl.1} parent=1 // loop_exit
      _
    %439 = vsyncpa [#allocation3], 1
    %s440 = scalar_lea.sflag [#allocation3], 1
    %441 = vsyncpa %s440, 1

</llo_original>
